<compile_context>
chip_gen: v7x
topology: tpu7x:2x2x1
jax: 0.10.0
libtpu: 0.0.40
codegen_flags: <defaults>
</compile_context>

<pallas_src>
import functools

import jax
import jax.numpy as jnp
from jax.experimental import pallas as pl
from jax.experimental.pallas import tpu as pltpu


def _round_up(n, m):
    return pl.cdiv(n, m) * m


def _policy_kernel(x_ref, w1_ref, b1_ref, w2_ref, b2_ref, wh_ref, bh_ref,
                   probs_ref, value_ref, *, action_size):
    # hidden layer 1: relu(x @ W1 + b1)      (TB, S) @ (S, 128)
    h1 = jnp.dot(x_ref[...], w1_ref[...], preferred_element_type=jnp.float32)
    h1 = jnp.maximum(h1 + b1_ref[...], 0.0)

    # hidden layer 2: relu(h1 @ W2 + b2)     (TB, 128) @ (128, 64)
    h2 = jnp.dot(h1, w2_ref[...], preferred_element_type=jnp.float32)
    h2 = jnp.maximum(h2 + b2_ref[...], 0.0)

    # fused heads: single lane-dense (TB, 64) @ (64, 128) matmul.
    #   lanes [0, A)   -> action logits
    #   lane  A        -> state value
    #   lanes (A, 128) -> zero padding (weights & bias are zero there)
    heads = jnp.dot(h2, wh_ref[...], preferred_element_type=jnp.float32)
    heads = heads + bh_ref[...]

    lane = jax.lax.broadcasted_iota(jnp.int32, heads.shape, dimension=1)
    is_logit = lane < action_size

    # Masked softmax over the logit lanes only.  Padding lanes become exp(-inf)
    # == 0, so they never touch the denominator.  Exact divide (not approx).
    masked = jnp.where(is_logit, heads, -jnp.inf)
    m = jnp.max(masked, axis=-1, keepdims=True)
    e = jnp.exp(masked - m)
    denom = jnp.sum(e, axis=-1, keepdims=True)
    probs = e / denom

    # Compact outputs: probs -> (TB, A), value -> (TB, 1).
    probs_ref[...] = probs[:, :action_size].astype(probs_ref.dtype)
    value = jnp.sum(jnp.where(lane == action_size, heads, 0.0),
                    axis=-1, keepdims=True)
    value_ref[...] = value.astype(value_ref.dtype)


def fuse_head_params(params):
    """Precompute the fused, lane-padded head weights ONCE (hoisted out of the
    per-forward-call path)."""
    wa, wv, ba, bv = params["wa"], params["wv"], params["ba"], params["bv"]
    h2_dim, a = wa.shape
    out_lanes = max(128, _round_up(a + 1, 128))
    wh = (jnp.zeros((h2_dim, out_lanes), jnp.float32)
          .at[:, :a].set(wa).at[:, a:a + 1].set(wv))
    bh = (jnp.zeros((1, out_lanes), jnp.float32)
          .at[:, :a].set(ba).at[:, a:a + 1].set(bv))
    return dict(params, wh=wh, bh=bh)


def quantum_policy_forward(x, params, *, block_b=2048):
    """x: (B, state_size) float32.  params: weights/biases (see init_params),
    ideally already passed through fuse_head_params.

    Returns (action_probs (B, A), state_value (B, 1)).

    block_b: max batch tile.  2048 keeps double-buffered x/out tiles plus the
    f32 intermediates (~3 MiB at tb=2048) well under even v5e's 16 MiB default
    scoped-VMEM limit; raise vmem_limit_bytes if you go much larger.
    """
    if "wh" not in params:           # fallback; prefer fusing once at init
        params = fuse_head_params(params)

    B, S = x.shape
    A = params["wa"].shape[1]
    w_heads, b_heads = params["wh"], params["bh"]
    out_lanes = w_heads.shape[1]

    # ---- batch tiling -------------------------------------------------------
    # Big tiles amortize the ~0.35 us per-grid-step overhead; medium batches
    # are still split into >= 2 tiles so both v7x TensorCores get work.
    if B > block_b:
        tb = block_b
    elif B >= 64:
        tb = _round_up(pl.cdiv(B, 2), 8)
    else:
        tb = B                              # single block == full array dims
    b_pad = _round_up(B, tb)
    # TODO(synk): handle the ragged last tile in-kernel instead of padding x.
    x_in = x if b_pad == B else jnp.pad(x, ((0, b_pad - B), (0, 0)))
    grid = (b_pad // tb,)

    const = lambda shape: pl.BlockSpec(shape, lambda i: (0, 0))
    in_specs = [
        pl.BlockSpec((tb, S), lambda i: (i, 0)),           # x: tiled over batch
        const(params["w1"].shape), const(params["b1"].shape),
        const(params["w2"].shape), const(params["b2"].shape),
        const(w_heads.shape), const(b_heads.shape),        # weights VMEM-resident
    ]
    out_specs = [
        pl.BlockSpec((tb, A), lambda i: (i, 0)),           # action probs
        pl.BlockSpec((tb, 1), lambda i: (i, 0)),           # state value
    ]
    out_shape = (jax.ShapeDtypeStruct((b_pad, A), jnp.float32),
                 jax.ShapeDtypeStruct((b_pad, 1), jnp.float32))

    flops = 2 * b_pad * (S * 128 + 128 * 64 + 64 * out_lanes)
    bytes_accessed = 4 * (b_pad * (S + A + 1)
                          + S * 128 + 128 + 128 * 64 + 64
                          + 64 * out_lanes + out_lanes)
    cost = pl.CostEstimate(flops=flops,
                           transcendentals=b_pad * out_lanes,
                           bytes_accessed=bytes_accessed)

    probs_pad, value_pad = pl.pallas_call(
        functools.partial(_policy_kernel, action_size=A),
        out_shape=out_shape,
        grid=grid,
        in_specs=in_specs,
        out_specs=out_specs,
        compiler_params=pltpu.CompilerParams(
            dimension_semantics=("parallel",)),
        cost_estimate=cost,
    )(x_in, params["w1"], params["b1"], params["w2"], params["b2"],
      w_heads, b_heads)

    return probs_pad[:B], value_pad[:B]


def init_params(key, state_size, action_size):
    """Deterministic PyTorch-style uniform(-1/sqrt(fan_in), 1/sqrt(fan_in)) init."""
    def linear(k, fan_in, fan_out):
        kw, kb = jax.random.split(k)
        bound = 1.0 / jnp.sqrt(fan_in)
        w = jax.random.uniform(kw, (fan_in, fan_out), jnp.float32, -bound, bound)
        b = jax.random.uniform(kb, (1, fan_out), jnp.float32, -bound, bound)
        return w, b

    k1, k2, k3, k4 = jax.random.split(key, 4)
    w1, b1 = linear(k1, state_size, 128)
    w2, b2 = linear(k2, 128, 64)
    wa, ba = linear(k3, 64, action_size)
    wv, bv = linear(k4, 64, 1)
    return dict(w1=w1, b1=b1, w2=w2, b2=b2, wa=wa, ba=ba, wv=wv, bv=bv)


def reference_forward(x, p):
    h1 = jax.nn.relu(x @ p["w1"] + p["b1"])
    h2 = jax.nn.relu(h1 @ p["w2"] + p["b2"])
    probs = jax.nn.softmax(h2 @ p["wa"] + p["ba"], axis=-1)
    value = h2 @ p["wv"] + p["bv"]
    return probs, value


if __name__ == "__main__":
    key = jax.random.PRNGKey(0)
    kx, kx2, kp = jax.random.split(key, 3)

    state_size = 16
    action_size = 8
    params = fuse_head_params(init_params(kp, state_size, action_size))

    fwd = jax.jit(quantum_policy_forward)

    # Small RL-style batch (single block, grid=(1,)).
    batch = 8
    x = jax.random.normal(kx, (batch, state_size), jnp.float32)
    action_probs, state_value = fwd(x, params)
    jax.block_until_ready((action_probs, state_value))

    ref_probs, ref_value = reference_forward(x, params)
    assert action_probs.shape == (batch, action_size)
    assert state_value.shape == (batch, 1)
    assert jnp.allclose(action_probs, ref_probs, atol=1e-4, rtol=1e-4)
    assert jnp.allclose(state_value, ref_value, atol=5e-4, rtol=5e-4)

    # Larger batch exercising the multi-block grid + ragged-tail padding path.
    batch2 = 80
    x2 = jax.random.normal(kx2, (batch2, state_size), jnp.float32)
    probs2, value2 = quantum_policy_forward(x2, params, block_b=32)
    jax.block_until_ready((probs2, value2))
    ref_probs2, ref_value2 = reference_forward(x2, params)
    assert probs2.shape == (batch2, action_size)
    assert value2.shape == (batch2, 1)
    assert jnp.allclose(probs2, ref_probs2, atol=1e-4, rtol=1e-4)
    assert jnp.allclose(value2, ref_value2, atol=5e-4, rtol=5e-4)

    print("KERNEL_OK")
</pallas_src>

<mosaic_0001>
module attributes {stable_mosaic.version = 11 : i64} {
  func.func @_policy_kernel(%arg0: i32, %arg1: memref<8x16xf32, #tpu.memory_space<vmem>>, %arg2: memref<16x128xf32, #tpu.memory_space<vmem>>, %arg3: memref<1x128xf32, #tpu.memory_space<vmem>>, %arg4: memref<128x64xf32, #tpu.memory_space<vmem>>, %arg5: memref<1x64xf32, #tpu.memory_space<vmem>>, %arg6: memref<64x128xf32, #tpu.memory_space<vmem>>, %arg7: memref<1x128xf32, #tpu.memory_space<vmem>>, %arg8: memref<8x8xf32, #tpu.memory_space<vmem>>, %arg9: memref<8x1xf32, #tpu.memory_space<vmem>>) attributes {dimension_semantics = [#tpu.dimension_semantics<parallel>], iteration_bounds = array<i64: 1>, scalar_prefetch = 0 : i64, scratch_operands = 0 : i64, tpu.core_type = #tpu.core_type<tc>, window_params = [{transform_indices = @transform_0, window_bounds = array<i64: 8, 16>}, {pipeline_mode = #tpu.pipeline_mode<synchronous>, transform_indices = @transform_1, window_bounds = array<i64: 16, 128>}, {pipeline_mode = #tpu.pipeline_mode<synchronous>, transform_indices = @transform_2, window_bounds = array<i64: 1, 128>}, {pipeline_mode = #tpu.pipeline_mode<synchronous>, transform_indices = @transform_3, window_bounds = array<i64: 128, 64>}, {pipeline_mode = #tpu.pipeline_mode<synchronous>, transform_indices = @transform_4, window_bounds = array<i64: 1, 64>}, {pipeline_mode = #tpu.pipeline_mode<synchronous>, transform_indices = @transform_5, window_bounds = array<i64: 64, 128>}, {pipeline_mode = #tpu.pipeline_mode<synchronous>, transform_indices = @transform_6, window_bounds = array<i64: 1, 128>}, {transform_indices = @transform_7, window_bounds = array<i64: 8, 8>}, {transform_indices = @transform_8, window_bounds = array<i64: 8, 1>}]} {
    %c0 = arith.constant 0 : index
    %c0_0 = arith.constant 0 : index
    %0 = vector.load %arg1[%c0, %c0_0] : memref<8x16xf32, #tpu.memory_space<vmem>>, vector<8x16xf32>
    %c0_1 = arith.constant 0 : index
    %c0_2 = arith.constant 0 : index
    %1 = vector.load %arg2[%c0_1, %c0_2] : memref<16x128xf32, #tpu.memory_space<vmem>>, vector<16x128xf32>
    %cst = arith.constant dense<0.000000e+00> : vector<8x128xf32>
    %2 = tpu.matmul %0, %1, %cst {dimension_numbers = #tpu.dot_dimension_numbers<[1], [0], [0], [1], [0, 0, 1, 1], [], []>} : vector<8x16xf32>, vector<16x128xf32>, vector<8x128xf32> -> vector<8x128xf32>
    %c0_3 = arith.constant 0 : index
    %c0_4 = arith.constant 0 : index
    %3 = vector.load %arg3[%c0_3, %c0_4] : memref<1x128xf32, #tpu.memory_space<vmem>>, vector<1x128xf32>
    %4 = vector.broadcast %3 : vector<1x128xf32> to vector<8x128xf32>
    %5 = arith.addf %2, %4 : vector<8x128xf32>
    %cst_5 = arith.constant 0.000000e+00 : f32
    %6 = vector.broadcast %cst_5 : f32 to vector<8x128xf32>
    %7 = arith.maximumf %5, %6 : vector<8x128xf32>
    %c0_6 = arith.constant 0 : index
    %c0_7 = arith.constant 0 : index
    %8 = vector.load %arg4[%c0_6, %c0_7] : memref<128x64xf32, #tpu.memory_space<vmem>>, vector<128x64xf32>
    %cst_8 = arith.constant dense<0.000000e+00> : vector<8x64xf32>
    %9 = tpu.matmul %7, %8, %cst_8 {dimension_numbers = #tpu.dot_dimension_numbers<[1], [0], [0], [1], [0, 0, 1, 1], [], []>} : vector<8x128xf32>, vector<128x64xf32>, vector<8x64xf32> -> vector<8x64xf32>
    %c0_9 = arith.constant 0 : index
    %c0_10 = arith.constant 0 : index
    %10 = vector.load %arg5[%c0_9, %c0_10] : memref<1x64xf32, #tpu.memory_space<vmem>>, vector<1x64xf32>
    %11 = vector.broadcast %10 : vector<1x64xf32> to vector<8x64xf32>
    %12 = arith.addf %9, %11 : vector<8x64xf32>
    %cst_11 = arith.constant 0.000000e+00 : f32
    %13 = vector.broadcast %cst_11 : f32 to vector<8x64xf32>
    %14 = arith.maximumf %12, %13 : vector<8x64xf32>
    %c0_12 = arith.constant 0 : index
    %c0_13 = arith.constant 0 : index
    %15 = vector.load %arg6[%c0_12, %c0_13] : memref<64x128xf32, #tpu.memory_space<vmem>>, vector<64x128xf32>
    %cst_14 = arith.constant dense<0.000000e+00> : vector<8x128xf32>
    %16 = tpu.matmul %14, %15, %cst_14 {dimension_numbers = #tpu.dot_dimension_numbers<[1], [0], [0], [1], [0, 0, 1, 1], [], []>} : vector<8x64xf32>, vector<64x128xf32>, vector<8x128xf32> -> vector<8x128xf32>
    %c0_15 = arith.constant 0 : index
    %c0_16 = arith.constant 0 : index
    %17 = vector.load %arg7[%c0_15, %c0_16] : memref<1x128xf32, #tpu.memory_space<vmem>>, vector<1x128xf32>
    %18 = vector.broadcast %17 : vector<1x128xf32> to vector<8x128xf32>
    %19 = arith.addf %16, %18 : vector<8x128xf32>
    %20 = tpu.iota {dimensions = array<i32: 1>} : vector<8x128xi32>
    %c8_i32 = arith.constant 8 : i32
    %21 = vector.broadcast %c8_i32 : i32 to vector<8x128xi32>
    %22 = arith.cmpi slt, %20, %21 : vector<8x128xi32>
    %cst_17 = arith.constant 0xFF800000 : f32
    %23 = vector.broadcast %cst_17 : f32 to vector<8x128xf32>
    %24 = arith.select %22, %19, %23 : vector<8x128xi1>, vector<8x128xf32>
    %cst_18 = arith.constant dense<0xFF800000> : vector<8xf32>
    %25 = vector.multi_reduction <maximumf>, %24, %cst_18 [1] : vector<8x128xf32> to vector<8xf32>
    %26 = vector.shape_cast %25 : vector<8xf32> to vector<8x1xf32>
    %27 = vector.broadcast %26 : vector<8x1xf32> to vector<8x128xf32>
    %28 = arith.subf %24, %27 : vector<8x128xf32>
    %29 = math.exp %28 : vector<8x128xf32>
    %cst_19 = arith.constant dense<0.000000e+00> : vector<8xf32>
    %30 = vector.multi_reduction <add>, %29, %cst_19 [1] : vector<8x128xf32> to vector<8xf32>
    %31 = vector.shape_cast %30 : vector<8xf32> to vector<8x1xf32>
    %32 = vector.broadcast %31 : vector<8x1xf32> to vector<8x128xf32>
    %33 = arith.divf %29, %32 : vector<8x128xf32>
    %34 = vector.extract_strided_slice %33 {offsets = [0, 0], sizes = [8, 8], strides = [1, 1]} : vector<8x128xf32> to vector<8x8xf32>
    %c0_20 = arith.constant 0 : index
    %c0_21 = arith.constant 0 : index
    %35 = vector.load %arg8[%c0_20, %c0_21] : memref<8x8xf32, #tpu.memory_space<vmem>>, vector<8x8xf32>
    tpu.vector_store %arg8[%c0_20, %c0_21], %34 {strides = array<i32>} : memref<8x8xf32, #tpu.memory_space<vmem>>, vector<8x8xf32>,
    %c8_i32_22 = arith.constant 8 : i32
    %36 = vector.broadcast %c8_i32_22 : i32 to vector<8x128xi32>
    %37 = arith.cmpi eq, %20, %36 : vector<8x128xi32>
    %cst_23 = arith.constant 0.000000e+00 : f32
    %38 = vector.broadcast %cst_23 : f32 to vector<8x128xf32>
    %39 = arith.select %37, %19, %38 : vector<8x128xi1>, vector<8x128xf32>
    %cst_24 = arith.constant dense<0.000000e+00> : vector<8xf32>
    %40 = vector.multi_reduction <add>, %39, %cst_24 [1] : vector<8x128xf32> to vector<8xf32>
    %41 = vector.shape_cast %40 : vector<8xf32> to vector<8x1xf32>
    %c0_25 = arith.constant 0 : index
    %c0_26 = arith.constant 0 : index
    %42 = vector.load %arg9[%c0_25, %c0_26] : memref<8x1xf32, #tpu.memory_space<vmem>>, vector<8x1xf32>
    tpu.vector_store %arg9[%c0_25, %c0_26], %41 {strides = array<i32>} : memref<8x1xf32, #tpu.memory_space<vmem>>, vector<8x1xf32>,
    return
  }
  func.func @transform_0(%arg0: i32) -> (i32, i32) {
    %c0_i32 = arith.constant 0 : i32
    %c0_i32_0 = arith.constant 0 : i32
    return %arg0, %c0_i32 : i32, i32
  }
  func.func @transform_1(%arg0: i32) -> (i32, i32) {
    %c0_i32 = arith.constant 0 : i32
    %c0_i32_0 = arith.constant 0 : i32
    %c0_i32_1 = arith.constant 0 : i32
    return %c0_i32, %c0_i32_0 : i32, i32
  }
  func.func @transform_2(%arg0: i32) -> (i32, i32) {
    %c0_i32 = arith.constant 0 : i32
    %c0_i32_0 = arith.constant 0 : i32
    %c0_i32_1 = arith.constant 0 : i32
    return %c0_i32, %c0_i32_0 : i32, i32
  }
  func.func @transform_3(%arg0: i32) -> (i32, i32) {
    %c0_i32 = arith.constant 0 : i32
    %c0_i32_0 = arith.constant 0 : i32
    %c0_i32_1 = arith.constant 0 : i32
    return %c0_i32, %c0_i32_0 : i32, i32
  }
  func.func @transform_4(%arg0: i32) -> (i32, i32) {
    %c0_i32 = arith.constant 0 : i32
    %c0_i32_0 = arith.constant 0 : i32
    %c0_i32_1 = arith.constant 0 : i32
    return %c0_i32, %c0_i32_0 : i32, i32
  }
  func.func @transform_5(%arg0: i32) -> (i32, i32) {
    %c0_i32 = arith.constant 0 : i32
    %c0_i32_0 = arith.constant 0 : i32
    %c0_i32_1 = arith.constant 0 : i32
    return %c0_i32, %c0_i32_0 : i32, i32
  }
  func.func @transform_6(%arg0: i32) -> (i32, i32) {
    %c0_i32 = arith.constant 0 : i32
    %c0_i32_0 = arith.constant 0 : i32
    %c0_i32_1 = arith.constant 0 : i32
    return %c0_i32, %c0_i32_0 : i32, i32
  }
  func.func @transform_7(%arg0: i32) -> (i32, i32) {
    %c0_i32 = arith.constant 0 : i32
    %c0_i32_0 = arith.constant 0 : i32
    return %arg0, %c0_i32 : i32, i32
  }
  func.func @transform_8(%arg0: i32) -> (i32, i32) {
    %c0_i32 = arith.constant 0 : i32
    %c0_i32_0 = arith.constant 0 : i32
    return %arg0, %c0_i32 : i32, i32
  }
}

</mosaic_0001>

<llo_original>
// kernel: quantum_policy_forward.1
$region0: #{quantum_policy_forward.1}
  #allocation0 [shape = 'u32[]', space=smem, size = 0x4, offset = 0x4, fixed_abs, tag = 'smem constant byte address 0x4 - core index']
  #allocation1 [shape = 'u32[144,128]{1,0:T(1,128)}', space=vmem, size = 0x12000, scoped, tag = 'internal scratch']
  %s0 = inlined_call_operand.vmem [shape: f32[8,16], index: 0, kind: input, shape index: {}]
  %s1 = inlined_call_operand.vmem [shape: f32[16,128], index: 1, kind: input, shape index: {}]
  %s2 = inlined_call_operand.vmem [shape: f32[1,128], index: 2, kind: input, shape index: {}]
  %s3 = inlined_call_operand.vmem [shape: f32[128,64], index: 3, kind: input, shape index: {}]
  %s4 = inlined_call_operand.vmem [shape: f32[1,64], index: 4, kind: input, shape index: {}]
  %s5 = inlined_call_operand.vmem [shape: f32[64,128], index: 5, kind: input, shape index: {}]
  %s6 = inlined_call_operand.vmem [shape: f32[1,128], index: 6, kind: input, shape index: {}]
  %s7 = inlined_call_operand.hbm [shape: f32[8,8], index: 7, kind: output, shape index: {0}]
  %s8 = inlined_call_operand.vmem [shape: f32[8,1], index: 8, kind: output, shape index: {1}]
  %9 = xla_tuple %s7, %s8
  %s10 = sld [smem:[#allocation0]]
  $region46: #{quantum_policy_forward.1} parent=0
    _
  %s12 = ssub.s32 1, %s10
  %s13 = scalar_select 0, %s12, %s10
  $region1: #{quantum_policy_forward.1} parent=0
    #allocation2 [shape = 'u8[4096]{0}', space=vmem, size = 0x1000, scoped, tag = 'output window, operand 0, single buffered']
    #allocation3 [shape = 's32[1]{0}', space=sflag, size = 0x4, scoped, tag = 'scoped memory for quantum_policy_forward.1']
    %14 = vsyncpa [#allocation3], 0
    // Predicated region
    $region2: #{quantum_policy_forward.1} parent=1 // pred_check
      _
    $region3: #{quantum_policy_forward.1} parent=1 // pred_check_branch
      %16 = sbr.rel (0) target = $region5
    $region4: #{quantum_policy_forward.1} parent=1 // pred_region
      _
    $region5: #{quantum_policy_forward.1} parent=1 // pred_fallthru
      _
    // Predicated region
    $region6: #{quantum_policy_forward.1} parent=1 // pred_check
      _
    $region7: #{quantum_policy_forward.1} parent=1 // pred_check_branch
      %18 = sbr.rel (0) target = $region9
    $region8: #{quantum_policy_forward.1} parent=1 // pred_region
      _
    $region9: #{quantum_policy_forward.1} parent=1 // pred_fallthru
      _
    // Predicated region
    $region10: #{quantum_policy_forward.1} parent=1 // pred_check
      _
    $region11: #{quantum_policy_forward.1} parent=1 // pred_check_branch
      %20 = sbr.rel (0) target = $region13
    $region12: #{quantum_policy_forward.1} parent=1 // pred_region
      _
    $region13: #{quantum_policy_forward.1} parent=1 // pred_fallthru
      _
    // Predicated region
    $region14: #{quantum_policy_forward.1} parent=1 // pred_check
      _
    $region15: #{quantum_policy_forward.1} parent=1 // pred_check_branch
      %22 = sbr.rel (0) target = $region17
    $region16: #{quantum_policy_forward.1} parent=1 // pred_region
      _
    $region17: #{quantum_policy_forward.1} parent=1 // pred_fallthru
      _
    // Predicated region
    $region18: #{quantum_policy_forward.1} parent=1 // pred_check
      _
    $region19: #{quantum_policy_forward.1} parent=1 // pred_check_branch
      %24 = sbr.rel (0) target = $region21
    $region20: #{quantum_policy_forward.1} parent=1 // pred_region
      _
    $region21: #{quantum_policy_forward.1} parent=1 // pred_fallthru
      _
    // Predicated region
    $region22: #{quantum_policy_forward.1} parent=1 // pred_check
      _
    $region23: #{quantum_policy_forward.1} parent=1 // pred_check_branch
      %26 = sbr.rel (0) target = $region25
    $region24: #{quantum_policy_forward.1} parent=1 // pred_region
      _
    $region25: #{quantum_policy_forward.1} parent=1 // pred_fallthru
      _
    // Predicated region
    $region26: #{quantum_policy_forward.1} parent=1 // pred_check
      _
    $region27: #{quantum_policy_forward.1} parent=1 // pred_check_branch
      %28 = sbr.rel (0) target = $region29
    $region28: #{quantum_policy_forward.1} parent=1 // pred_region
      _
    $region29: #{quantum_policy_forward.1} parent=1 // pred_fallthru
      _
    %v29 = vld [vmem:[%s0] sm:$0xff]
    %v30 = vld [vmem:[%s1] sm:$0xff]
    %v31 = vld [vmem:[%s1 + $0x8] sm:$0xff]
    %v32 = vld [vmem:[%s2] sm:$0x1]
    %v34 = vlaneseq
    %v35 = vshrl.u32 %v34, 7
    %v36 = vsub.s32 0, %v35
    %v37 = vrot.slane %v32, %v36
    %vm39 = vcmask 130048
    %v41 = vsel %vm39, %v29, 0
    %43 = vmatprep.subr.mxu0 0.0
    %44 = vmatpush1.msra.mxu0 %v30
    %45 = vmatprep.subr.mxu0 0.0
    %46 = vmatpush1.msra.mxu0 %v31
    %47 = vmatprep.subr.mxu0 0.0
    %48 = vmatpush1.msra.mxu0 0.0
    %49 = vmatprep.subr.mxu0 0.0
    %50 = vmatpush1.msra.mxu0 0.0
    %51 = vmatprep.subr.mxu0 0.0
    %52 = vmatpush1.msra.mxu0 0.0
    %53 = vmatprep.subr.mxu0 0.0
    %54 = vmatpush1.msra.mxu0 0.0
    %55 = vmatprep.subr.mxu0 0.0
    %56 = vmatpush1.msra.mxu0 0.0
    %57 = vmatprep.subr.mxu0 0.0
    %58 = vmatpush1.msra.mxu0 0.0
    %59 = vmatprep.subr.mxu0 0.0
    %60 = vmatpush1.msra.mxu0 0.0
    %61 = vmatprep.subr.mxu0 0.0
    %62 = vmatpush1.msra.mxu0 0.0
    %63 = vmatprep.subr.mxu0 0.0
    %64 = vmatpush1.msra.mxu0 0.0
    %65 = vmatprep.subr.mxu0 0.0
    %66 = vmatpush1.msra.mxu0 0.0
    %67 = vmatprep.subr.mxu0 0.0
    %68 = vmatpush1.msra.mxu0 0.0
    %69 = vmatprep.subr.mxu0 0.0
    %70 = vmatpush1.msra.mxu0 0.0
    %71 = vmatprep.subr.mxu0 0.0
    %72 = vmatpush1.msra.mxu0 0.0
    %73 = vmatprep.subr.mxu0 0.0
    %74 = vmatpush1.msra.mxu0 0.0
    %75 = vmatprep.subr.mxu0 0.0
    %76 = vmatpush1.msra.mxu0 0.0
    %77 = vmatprep.subr.mxu0 0.0
    %78 = vmatpush1.msra.mxu0 0.0
    %79 = vmatprep.subr.mxu0 0.0
    %80 = vmatpush1.msra.mxu0 0.0
    %81 = vmatprep.subr.mxu0 0.0
    %82 = vmatpush1.msra.mxu0 0.0
    %83 = vmatprep.subr.mxu0 0.0
    %84 = vmatpush1.msra.mxu0 0.0
    %85 = vmatprep.subr.mxu0 0.0
    %86 = vmatpush1.msra.mxu0 0.0
    %87 = vmatprep.subr.mxu0 0.0
    %88 = vmatpush1.msra.mxu0 0.0
    %89 = vmatprep.subr.mxu0 0.0
    %90 = vmatpush1.msra.mxu0 0.0
    %91 = vmatprep.subr.mxu0 0.0
    %92 = vmatpush1.msra.mxu0 0.0
    %93 = vmatprep.subr.mxu0 0.0
    %94 = vmatpush1.msra.mxu0 0.0
    %95 = vmatprep.subr.mxu0 0.0
    %96 = vmatpush1.msra.mxu0 0.0
    %97 = vmatprep.subr.mxu0 0.0
    %98 = vmatpush1.msra.mxu0 0.0
    %99 = vmatprep.subr.mxu0 0.0
    %100 = vmatpush1.msra.mxu0 0.0
    %101 = vmatprep.subr.mxu0 0.0
    %102 = vmatpush1.msra.mxu0 0.0
    %103 = vmatprep.subr.mxu0 0.0
    %104 = vmatpush1.msra.mxu0 0.0
    %105 = vmatprep.subr.mxu0 0.0
    %106 = vmatpush1.msra.mxu0 0.0
    %107 = vmatprep.mubr.f32.mxu0 0.0
    %108 = vmatmul.mubr.f32.gmra.mrb[0].mxu0 %v41
    %v109 = vpop.f32.mrb[0].mxu0
    %v110 = vadd.f32 %v37, %v109
    %v111 = vpop.f32.mrb[0].mxu0
    %112 = vdwg.mxu0
    %v113 = vmax.f32 %v110, 0.0
    %v114 = vld [vmem:[%s3] sm:$0xff]
    %v115 = vld [vmem:[%s3 + $0x8] sm:$0xff]
    %v116 = vld [vmem:[%s3 + $0x10] sm:$0xff]
    %v117 = vld [vmem:[%s3 + $0x18] sm:$0xff]
    %v118 = vld [vmem:[%s3 + $0x20] sm:$0xff]
    %v119 = vld [vmem:[%s3 + $0x28] sm:$0xff]
    %v120 = vld [vmem:[%s3 + $0x30] sm:$0xff]
    %v121 = vld [vmem:[%s3 + $0x38] sm:$0xff]
    %v122 = vld [vmem:[%s3 + $0x40] sm:$0xff]
    %v123 = vld [vmem:[%s3 + $0x48] sm:$0xff]
    %v124 = vld [vmem:[%s3 + $0x50] sm:$0xff]
    %v125 = vld [vmem:[%s3 + $0x58] sm:$0xff]
    %v126 = vld [vmem:[%s3 + $0x60] sm:$0xff]
    %v127 = vld [vmem:[%s3 + $0x68] sm:$0xff]
    %v128 = vld [vmem:[%s3 + $0x70] sm:$0xff]
    %v129 = vld [vmem:[%s3 + $0x78] sm:$0xff]
    %v130 = vld [vmem:[%s4] sm:$0x1]
    %v132 = vlaneseq
    %v133 = vshrl.u32 %v132, 7
    %v134 = vsub.s32 0, %v133
    %v135 = vrot.slane %v130, %v134
    %137 = vmatprep.subr.mxu0 0.0
    %138 = vmatpush1.msra.mxu0 %v114
    %139 = vmatprep.subr.mxu0 0.0
    %140 = vmatpush1.msra.mxu0 %v115
    %141 = vmatprep.subr.mxu0 0.0
    %142 = vmatpush1.msra.mxu0 %v116
    %143 = vmatprep.subr.mxu0 0.0
    %144 = vmatpush1.msra.mxu0 %v117
    %145 = vmatprep.subr.mxu0 0.0
    %146 = vmatpush1.msra.mxu0 %v118
    %147 = vmatprep.subr.mxu0 0.0
    %148 = vmatpush1.msra.mxu0 %v119
    %149 = vmatprep.subr.mxu0 0.0
    %150 = vmatpush1.msra.mxu0 %v120
    %151 = vmatprep.subr.mxu0 0.0
    %152 = vmatpush1.msra.mxu0 %v121
    %153 = vmatprep.subr.mxu0 0.0
    %154 = vmatpush1.msra.mxu0 %v122
    %155 = vmatprep.subr.mxu0 0.0
    %156 = vmatpush1.msra.mxu0 %v123
    %157 = vmatprep.subr.mxu0 0.0
    %158 = vmatpush1.msra.mxu0 %v124
    %159 = vmatprep.subr.mxu0 0.0
    %160 = vmatpush1.msra.mxu0 %v125
    %161 = vmatprep.subr.mxu0 0.0
    %162 = vmatpush1.msra.mxu0 %v126
    %163 = vmatprep.subr.mxu0 0.0
    %164 = vmatpush1.msra.mxu0 %v127
    %165 = vmatprep.subr.mxu0 0.0
    %166 = vmatpush1.msra.mxu0 %v128
    %167 = vmatprep.subr.mxu0 0.0
    %168 = vmatpush1.msra.mxu0 %v129
    %169 = vmatprep.subr.mxu0 0.0
    %170 = vmatpush1.msra.mxu0 0.0
    %171 = vmatprep.subr.mxu0 0.0
    %172 = vmatpush1.msra.mxu0 0.0
    %173 = vmatprep.subr.mxu0 0.0
    %174 = vmatpush1.msra.mxu0 0.0
    %175 = vmatprep.subr.mxu0 0.0
    %176 = vmatpush1.msra.mxu0 0.0
    %177 = vmatprep.subr.mxu0 0.0
    %178 = vmatpush1.msra.mxu0 0.0
    %179 = vmatprep.subr.mxu0 0.0
    %180 = vmatpush1.msra.mxu0 0.0
    %181 = vmatprep.subr.mxu0 0.0
    %182 = vmatpush1.msra.mxu0 0.0
    %183 = vmatprep.subr.mxu0 0.0
    %184 = vmatpush1.msra.mxu0 0.0
    %185 = vmatprep.subr.mxu0 0.0
    %186 = vmatpush1.msra.mxu0 0.0
    %187 = vmatprep.subr.mxu0 0.0
    %188 = vmatpush1.msra.mxu0 0.0
    %189 = vmatprep.subr.mxu0 0.0
    %190 = vmatpush1.msra.mxu0 0.0
    %191 = vmatprep.subr.mxu0 0.0
    %192 = vmatpush1.msra.mxu0 0.0
    %193 = vmatprep.subr.mxu0 0.0
    %194 = vmatpush1.msra.mxu0 0.0
    %195 = vmatprep.subr.mxu0 0.0
    %196 = vmatpush1.msra.mxu0 0.0
    %197 = vmatprep.subr.mxu0 0.0
    %198 = vmatpush1.msra.mxu0 0.0
    %199 = vmatprep.subr.mxu0 0.0
    %200 = vmatpush1.msra.mxu0 0.0
    %201 = vmatprep.mubr.f32.mxu0 0.0
    %202 = vmatmul.mubr.f32.gmra.mrb[0].mxu0 %v113
    %v203 = vpop.f32.mrb[0].mxu0
    %v204 = vadd.f32 %v135, %v203
    %v205 = vpop.f32.mrb[0].mxu0
    %206 = vdwg.mxu0
    %v207 = vmax.f32 %v204, 0.0
    %v208 = vld [vmem:[%s5] sm:$0xff]
    %v209 = vld [vmem:[%s5 + $0x8] sm:$0xff]
    %v210 = vld [vmem:[%s5 + $0x10] sm:$0xff]
    %v211 = vld [vmem:[%s5 + $0x18] sm:$0xff]
    %v212 = vld [vmem:[%s5 + $0x20] sm:$0xff]
    %v213 = vld [vmem:[%s5 + $0x28] sm:$0xff]
    %v214 = vld [vmem:[%s5 + $0x30] sm:$0xff]
    %v215 = vld [vmem:[%s5 + $0x38] sm:$0xff]
    %v216 = vld [vmem:[%s6] sm:$0x1]
    %v218 = vlaneseq
    %v219 = vshrl.u32 %v218, 7
    %v220 = vsub.s32 0, %v219
    %v221 = vrot.slane %v216, %v220
    %vm223 = vcmask 523264
    %v225 = vsel %vm223, %v207, 0
    %227 = vmatprep.subr.mxu0 0.0
    %228 = vmatpush1.msra.mxu0 %v208
    %229 = vmatprep.subr.mxu0 0.0
    %230 = vmatpush1.msra.mxu0 %v209
    %231 = vmatprep.subr.mxu0 0.0
    %232 = vmatpush1.msra.mxu0 %v210
    %233 = vmatprep.subr.mxu0 0.0
    %234 = vmatpush1.msra.mxu0 %v211
    %235 = vmatprep.subr.mxu0 0.0
    %236 = vmatpush1.msra.mxu0 %v212
    %237 = vmatprep.subr.mxu0 0.0
    %238 = vmatpush1.msra.mxu0 %v213
    %239 = vmatprep.subr.mxu0 0.0
    %240 = vmatpush1.msra.mxu0 %v214
    %241 = vmatprep.subr.mxu0 0.0
    %242 = vmatpush1.msra.mxu0 %v215
    %243 = vmatprep.subr.mxu0 0.0
    %244 = vmatpush1.msra.mxu0 0.0
    %245 = vmatprep.subr.mxu0 0.0
    %246 = vmatpush1.msra.mxu0 0.0
    %247 = vmatprep.subr.mxu0 0.0
    %248 = vmatpush1.msra.mxu0 0.0
    %249 = vmatprep.subr.mxu0 0.0
    %250 = vmatpush1.msra.mxu0 0.0
    %251 = vmatprep.subr.mxu0 0.0
    %252 = vmatpush1.msra.mxu0 0.0
    %253 = vmatprep.subr.mxu0 0.0
    %254 = vmatpush1.msra.mxu0 0.0
    %255 = vmatprep.subr.mxu0 0.0
    %256 = vmatpush1.msra.mxu0 0.0
    %257 = vmatprep.subr.mxu0 0.0
    %258 = vmatpush1.msra.mxu0 0.0
    %259 = vmatprep.subr.mxu0 0.0
    %260 = vmatpush1.msra.mxu0 0.0
    %261 = vmatprep.subr.mxu0 0.0
    %262 = vmatpush1.msra.mxu0 0.0
    %263 = vmatprep.subr.mxu0 0.0
    %264 = vmatpush1.msra.mxu0 0.0
    %265 = vmatprep.subr.mxu0 0.0
    %266 = vmatpush1.msra.mxu0 0.0
    %267 = vmatprep.subr.mxu0 0.0
    %268 = vmatpush1.msra.mxu0 0.0
    %269 = vmatprep.subr.mxu0 0.0
    %270 = vmatpush1.msra.mxu0 0.0
    %271 = vmatprep.subr.mxu0 0.0
    %272 = vmatpush1.msra.mxu0 0.0
    %273 = vmatprep.subr.mxu0 0.0
    %274 = vmatpush1.msra.mxu0 0.0
    %275 = vmatprep.subr.mxu0 0.0
    %276 = vmatpush1.msra.mxu0 0.0
    %277 = vmatprep.subr.mxu0 0.0
    %278 = vmatpush1.msra.mxu0 0.0
    %279 = vmatprep.subr.mxu0 0.0
    %280 = vmatpush1.msra.mxu0 0.0
    %281 = vmatprep.subr.mxu0 0.0
    %282 = vmatpush1.msra.mxu0 0.0
    %283 = vmatprep.subr.mxu0 0.0
    %284 = vmatpush1.msra.mxu0 0.0
    %285 = vmatprep.subr.mxu0 0.0
    %286 = vmatpush1.msra.mxu0 0.0
    %287 = vmatprep.subr.mxu0 0.0
    %288 = vmatpush1.msra.mxu0 0.0
    %289 = vmatprep.subr.mxu0 0.0
    %290 = vmatpush1.msra.mxu0 0.0
    %291 = vmatprep.mubr.f32.mxu0 0.0
    %292 = vmatmul.mubr.f32.gmra.mrb[0].mxu0 %v225
    %v293 = vpop.f32.mrb[0].mxu0
    %v294 = vadd.f32 %v221, %v293
    %v295 = vpop.f32.mrb[0].mxu0
    %296 = vdwg.mxu0
    %v297 = vlaneseq
    %v298 = vand.u32 %v297, 127
    %vm299 = vcmp.lt.s32.totalorder %v298, 8
    %v300 = vsel %vm299, %v294, -inf
    %301 = vmax.xlane.f32.xlu0 %v300
    %v302 = vpop.xlane.xlu0 %301
    %v303 = vsub.f32 %v300, %v302
    %v304 = vmul.f32 %v303, 1.442695
    %v305 = vpow.pop %v304
    %306 = vadd.xlane.f32.xlu0 %v305
    %v307 = vpop.xlane.xlu0 %306
    %v308 = vrcp.pop %v307
    %v309 = vmul.f32 %v305, %v308
    %vm310 = vcmask 64512
    %311 = vst.msk [vmem:[#allocation2] sm:$0xff] %vm310, %v309
    %vm312 = vcmp.eq.s32.totalorder %v298, 8
    %v313 = vsel %vm312, %v294, 0.0
    %314 = vadd.xlane.f32.xlu0 %v313
    %v315 = vpop.xlane.xlu0 %314
    %vm316 = vcmask 7168
    %317 = vst.msk [vmem:[%s8] sm:$0xff] %vm316, %v315
    // Predicated region
    $region30: #{quantum_policy_forward.1} parent=1 // pred_check
      _
    $region31: #{quantum_policy_forward.1} parent=1 // pred_check_branch
      %319 = sbr.rel (0) target = $region33
    $region32: #{quantum_policy_forward.1} parent=1 // pred_region
      %s321 = ssub.s32 128, 128
      %322 = vsyncadd [#allocation3], %s321
      %s324 = sshll.u32 [#allocation2], 4
      %s325 = int_to_ptr.vmem [resolvable:$true] %s324
      %327 = dma.vmem_to_hbm [thread:$0]  %s325, 128, %s7, [#allocation3]
    $region33: #{quantum_policy_forward.1} parent=1 // pred_fallthru
      _
    // Predicated region
    $region34: #{quantum_policy_forward.1} parent=1 // pred_check
      _
    $region35: #{quantum_policy_forward.1} parent=1 // pred_check_branch
      %329 = sbr.rel (0) target = $region37
    $region36: #{quantum_policy_forward.1} parent=1 // pred_region
      _
    $region37: #{quantum_policy_forward.1} parent=1 // pred_fallthru
      _
    // Predicated region
    $region38: #{quantum_policy_forward.1} parent=1 // pred_check
      _
    $region39: #{quantum_policy_forward.1} parent=1 // pred_check_branch
      %331 = sbr.rel (0) target = $region41
    $region40: #{quantum_policy_forward.1} parent=1 // pred_region
      %332 = dma.done [#allocation3], 128
    $region41: #{quantum_policy_forward.1} parent=1 // pred_fallthru
      _
    // Predicated region
    $region42: #{quantum_policy_forward.1} parent=1 // pred_check
      _
    $region43: #{quantum_policy_forward.1} parent=1 // pred_check_branch
      %334 = sbr.rel (0) target = $region45
    $region44: #{quantum_policy_forward.1} parent=1 // pred_region
      _
    $region45: #{quantum_policy_forward.1} parent=1 // pred_fallthru
      _
    %335 = vsyncpa [#allocation3], 1

</llo_original>
